<compile_context>
chip_gen: v7x
topology: tpu7x:2x2x1
jax: 0.10.0
libtpu: 0.0.40
codegen_flags: <defaults>
</compile_context>

<pallas_src>
import jax
import jax.numpy as jnp
from jax.experimental import pallas as pl
from jax.experimental.pallas import tpu as pltpu


# ----------------------------------------------------------------------------
# Pallas kernel: one grid step == (one batch tile of Bt rows) x (one L-chunk).
#   u_ref     (Lt, Bt, H)  f32   time-major input chunk (also the residual/skip)
#   lam_*     (1, P)       f32   discretized diagonal state matrix (re / im)
#   bT_ref    (H, 2P)      bf16  [B_bar_re^T | B_bar_im^T]
#   cT_ref    (2P, H)      bf16  [C_re^T ; -C_im^T]
#   d_ref     (1, H)       f32   feed-through D
#   s0_ref    (Bt, 2P)     f32   initial SSM state, packed [re | im]
# outputs:
#   y_ref     (Lt, Bt, H)  f32   layer output chunk
#   sN_ref    (Bt, 2P)     f32   SSM state, packed [re | im]; the block index is
#                                constant along the L axis, so this VMEM block is
#                                the state carry across sequence chunks.
# scratch:
#   xs_re_ref (Lt*Bt, P)   f32   Re(B_bar@u_k); overwritten in place with Re(x_k)
#   xs_im_ref (Lt*Bt, P)   f32   Im(B_bar@u_k); overwritten in place with Im(x_k)
# ----------------------------------------------------------------------------
def s5_layer_kernel(u_ref, lam_re_ref, lam_im_ref, bT_ref, cT_ref, d_ref, s0_ref,
                    y_ref, sN_ref, xs_re_ref, xs_im_ref):
    lt, bt, h = u_ref.shape
    p = lam_re_ref.shape[1]
    l_idx = pl.program_id(1)

    # Initialize the carried state from s0 on the first sequence chunk.
    @pl.when(l_idx == 0)
    def _():
        sN_ref[...] = s0_ref[...]

    u = u_ref[...].reshape(lt * bt, h)                       # (Lt*Bt, H) f32

    # Fused input projection on the MXU: [Re(Bu) | Im(Bu)] (bf16 ops, f32 acc).
    bu = jnp.dot(u.astype(jnp.bfloat16), bT_ref[...],
                 preferred_element_type=jnp.float32)         # (Lt*Bt, 2P)
    xs_re_ref[...] = bu[:, :p]
    xs_im_ref[...] = bu[:, p:]

    # Hoist broadcasts out of the recurrence loop.
    lam_re = jnp.broadcast_to(lam_re_ref[...], (bt, p))
    lam_im = jnp.broadcast_to(lam_im_ref[...], (bt, p))

    s = sN_ref[...]
    s_re0, s_im0 = s[:, :p], s[:, p:]

    # Sequential diagonal recurrence (f32): x_k = Lambda_bar * x_{k-1} + Bu_k.
    # Bu[k] is consumed exactly at step k -> overwrite it in place with x_k.
    def step(k, carry):
        s_re, s_im = carry
        off = pl.multiple_of(k * bt, bt)
        b_re = xs_re_ref[pl.ds(off, bt), :]                  # (Bt, P)
        b_im = xs_im_ref[pl.ds(off, bt), :]
        ns_re = lam_re * s_re - lam_im * s_im + b_re
        ns_im = lam_re * s_im + lam_im * s_re + b_im
        xs_re_ref[pl.ds(off, bt), :] = ns_re
        xs_im_ref[pl.ds(off, bt), :] = ns_im
        return ns_re, ns_im

    unroll = lt if lt <= 16 else 8
    sF_re, sF_im = jax.lax.fori_loop(0, lt, step, (s_re0, s_im0), unroll=unroll)
    sN_ref[...] = jnp.concatenate([sF_re, sF_im], axis=-1)

    # Fused output projection: Re(C @ x_k) = xs_re @ C_re^T - xs_im @ C_im^T.
    xs = jnp.concatenate([xs_re_ref[...], xs_im_ref[...]], axis=-1)
    y = jnp.dot(xs.astype(jnp.bfloat16), cT_ref[...],
                preferred_element_type=jnp.float32)
    y = y + u * d_ref[...]
    # TODO(synk): torch F.gelu defaults to the exact erf form; tanh-approx GELU
    # (EUP-friendly) is used here and in the in-script reference.
    y = jax.nn.gelu(y, approximate=True)
    # residual: skip == u (no norm is applied in the prenorm=False/batchnorm=False default)
    y_ref[...] = (u + y).reshape(lt, bt, h).astype(y_ref.dtype)


# ----------------------------------------------------------------------------
# Wrapper: parameter plumbing, layout plumbing (time-major), pallas_call.
# ----------------------------------------------------------------------------
def _largest_divisor_leq(n, cap):
    d = max(1, min(n, cap))
    while n % d:
        d -= 1
    return d


def _vmem_estimate_bytes(lt, bt, h, p):
    f32, bf16 = 4, 2
    io_blocks = 2 * 2 * (lt * bt * h * f32)                  # u + y blocks, double-buffered
    params = 2 * ((h * 2 * p + 2 * p * h) * bf16             # bT_cat, cT_cat
                  + (2 * p + h) * f32                        # lam_re, lam_im, d
                  + 2 * (bt * 2 * p * f32))                  # s0 block, sN block
    scratch = 2 * (lt * bt * p) * f32                        # xs_re + xs_im
    return io_blocks + params + scratch


def sequence_layer_forward(x, state, params, *, batch_tile=8, seq_chunk_cap=128):
    B, L, H = x.shape
    P = params["lambda_bar"].shape[0]

    Bt = batch_tile
    Bpad = ((B + Bt - 1) // Bt) * Bt
    Lt = _largest_divisor_leq(L, seq_chunk_cap)
    nb, nl = Bpad // Bt, L // Lt

    lam = params["lambda_bar"]
    Bb = params["B_bar"]
    C = params["C"]
    D = params["D"]

    lam_re = jnp.asarray(lam.real, jnp.float32).reshape(1, P)
    lam_im = jnp.asarray(lam.imag, jnp.float32).reshape(1, P)
    # Fused (re|im) weight blocks, bf16 for the MXU.
    bT_cat = jnp.concatenate([Bb.real.T, Bb.imag.T], axis=1).astype(jnp.bfloat16)   # (H, 2P)
    cT_cat = jnp.concatenate([C.real.T, -C.imag.T], axis=0).astype(jnp.bfloat16)    # (2P, H)
    d = jnp.asarray(D, jnp.float32).reshape(1, H)
    s0 = jnp.concatenate([state.real, state.imag], axis=1).astype(jnp.float32)      # (B, 2P)

    x32 = x.astype(jnp.float32)
    if Bpad != B:
        x32 = jnp.pad(x32, ((0, Bpad - B), (0, 0), (0, 0)))
        s0 = jnp.pad(s0, ((0, Bpad - B), (0, 0)))
    # Time-major layout so each recurrence step reads/writes a contiguous (Bt, P) tile.
    xt = jnp.transpose(x32, (1, 0, 2))                                               # (L, Bpad, H)

    seq_spec = pl.BlockSpec((Lt, Bt, H), lambda b, l: (l, b, 0))
    vec_spec = pl.BlockSpec((1, P), lambda b, l: (0, 0))
    bT_spec = pl.BlockSpec((H, 2 * P), lambda b, l: (0, 0))
    cT_spec = pl.BlockSpec((2 * P, H), lambda b, l: (0, 0))
    d_spec = pl.BlockSpec((1, H), lambda b, l: (0, 0))
    st_spec = pl.BlockSpec((Bt, 2 * P), lambda b, l: (b, 0))

    grid_spec = pltpu.PrefetchScalarGridSpec(
        num_scalar_prefetch=0,
        grid=(nb, nl),
        in_specs=[seq_spec, vec_spec, vec_spec, bT_spec, cT_spec, d_spec, st_spec],
        out_specs=[seq_spec, st_spec],
        scratch_shapes=[
            pltpu.VMEM((Lt * Bt, P), jnp.float32),   # Re(Bu) / Re(states), aliased
            pltpu.VMEM((Lt * Bt, P), jnp.float32),   # Im(Bu) / Im(states), aliased
        ],
    )

    out_shape = (
        jax.ShapeDtypeStruct((L, Bpad, H), jnp.float32),
        jax.ShapeDtypeStruct((Bpad, 2 * P), jnp.float32),
    )

    vmem_limit = int(min(48 * 1024 * 1024,
                         max(16 * 1024 * 1024, 4 * _vmem_estimate_bytes(Lt, Bt, H, P))))

    y_t, sN = pl.pallas_call(
        s5_layer_kernel,
        out_shape=out_shape,
        grid_spec=grid_spec,
        compiler_params=pltpu.CompilerParams(
            dimension_semantics=("parallel", "arbitrary"),
            vmem_limit_bytes=vmem_limit),
    )(xt, lam_re, lam_im, bT_cat, cT_cat, d, s0)

    y = jnp.transpose(y_t, (1, 0, 2))[:B]
    sN = sN[:B]
    new_state = (sN[:, :P] + 1j * sN[:, P:]).astype(jnp.complex64)
    return y, new_state


# ----------------------------------------------------------------------------
# Deterministic synthetic S5 parameters (shapes as in S5(d_model, ssm_size)),
# bilinear discretization matching the module default `discretization='bilinear'`.
# ----------------------------------------------------------------------------
def init_params(key, d_model, ssm_size, dt_min=1e-3, dt_max=1e-1, step_rescale=1.0):
    H, P = d_model, ssm_size
    k1, k2, k3, k4, k5, k6 = jax.random.split(key, 6)

    Lambda = (-0.5 * jnp.ones((P,)) + 1j * jnp.pi * jnp.arange(P)).astype(jnp.complex64)
    B = ((jax.random.normal(k1, (P, H)) + 1j * jax.random.normal(k2, (P, H)))
         / jnp.sqrt(2.0 * H)).astype(jnp.complex64)
    C = ((jax.random.normal(k3, (H, P)) + 1j * jax.random.normal(k4, (H, P)))
         * jnp.sqrt(0.5)).astype(jnp.complex64)
    D = jax.random.normal(k5, (H,), dtype=jnp.float32)
    log_step = jax.random.uniform(k6, (P,), minval=jnp.log(dt_min), maxval=jnp.log(dt_max))
    dt = (step_rescale * jnp.exp(log_step)).astype(jnp.float32)

    BL = 1.0 / (1.0 - (dt / 2.0) * Lambda)
    Lambda_bar = BL * (1.0 + (dt / 2.0) * Lambda)
    B_bar = (BL * dt)[:, None] * B

    return dict(lambda_bar=Lambda_bar.astype(jnp.complex64),
                B_bar=B_bar.astype(jnp.complex64),
                C=C, D=D)


# Pure-JAX (complex64 / f32) reference for correctness checking.
def reference_forward(x, state, params):
    lam, Bb, C, D = params["lambda_bar"], params["B_bar"], params["C"], params["D"]
    Bu = jnp.einsum("blh,ph->blp", x.astype(jnp.complex64), Bb)

    def per_batch(bu_b, s0_b):
        def scan_fn(s, bu_k):
            s = lam * s + bu_k
            return s, s
        sF, xs = jax.lax.scan(scan_fn, s0_b, bu_b)
        return sF, xs

    sF, xs = jax.vmap(per_batch)(Bu, state)
    y = jnp.einsum("blp,hp->blh", xs, C).real + x * D
    y = jax.nn.gelu(y, approximate=True)
    return x + y, sF


if __name__ == "__main__":
    batch, seq_len, d_model, ssm_size = 2, 8, 32, 32

    key = jax.random.PRNGKey(0)
    kx, ks1, ks2, kp = jax.random.split(key, 4)

    x = jax.random.normal(kx, (batch, seq_len, d_model), dtype=jnp.float32)
    state = (0.1 * jax.random.normal(ks1, (batch, ssm_size))
             + 0.1j * jax.random.normal(ks2, (batch, ssm_size))).astype(jnp.complex64)
    params = init_params(kp, d_model, ssm_size)

    y, new_state = sequence_layer_forward(x, state, params)
    y = jax.block_until_ready(y)
    new_state = jax.block_until_ready(new_state)

    y_ref, state_ref = reference_forward(x, state, params)
    # Tolerances account for bf16 MXU operands vs. the complex64/f32 reference
    # (the recurrence itself runs in f32 inside the kernel).
    assert jnp.max(jnp.abs(y - y_ref)) < 1e-1, "output mismatch vs reference"
    assert jnp.max(jnp.abs(new_state - state_ref)) < 2e-2, "state mismatch vs reference"
    assert y.shape == (batch, seq_len, d_model) and new_state.shape == (batch, ssm_size)

    print("KERNEL_OK")
</pallas_src>

<mosaic_0001>
module attributes {stable_mosaic.version = 11 : i64} {
  func.func @s5_layer_kernel(%arg0: i32, %arg1: i32, %arg2: memref<8x8x32xf32, #tpu.memory_space<vmem>>, %arg3: memref<1x32xf32, #tpu.memory_space<vmem>>, %arg4: memref<1x32xf32, #tpu.memory_space<vmem>>, %arg5: memref<32x64xbf16, #tpu.memory_space<vmem>>, %arg6: memref<64x32xbf16, #tpu.memory_space<vmem>>, %arg7: memref<1x32xf32, #tpu.memory_space<vmem>>, %arg8: memref<8x64xf32, #tpu.memory_space<vmem>>, %arg9: memref<8x8x32xf32, #tpu.memory_space<vmem>>, %arg10: memref<8x64xf32, #tpu.memory_space<vmem>>, %arg11: memref<64x32xf32, #tpu.memory_space<vmem>>, %arg12: memref<64x32xf32, #tpu.memory_space<vmem>>) attributes {dimension_semantics = [#tpu.dimension_semantics<parallel>, #tpu.dimension_semantics<arbitrary>], iteration_bounds = array<i64: 1, 1>, scalar_prefetch = 0 : i64, scratch_operands = 2 : i64, tpu.core_type = #tpu.core_type<tc>, window_params = [{transform_indices = @transform_0, window_bounds = array<i64: 8, 8, 32>}, {pipeline_mode = #tpu.pipeline_mode<synchronous>, transform_indices = @transform_1, window_bounds = array<i64: 1, 32>}, {pipeline_mode = #tpu.pipeline_mode<synchronous>, transform_indices = @transform_2, window_bounds = array<i64: 1, 32>}, {pipeline_mode = #tpu.pipeline_mode<synchronous>, transform_indices = @transform_3, window_bounds = array<i64: 32, 64>}, {pipeline_mode = #tpu.pipeline_mode<synchronous>, transform_indices = @transform_4, window_bounds = array<i64: 64, 32>}, {pipeline_mode = #tpu.pipeline_mode<synchronous>, transform_indices = @transform_5, window_bounds = array<i64: 1, 32>}, {transform_indices = @transform_6, window_bounds = array<i64: 8, 64>}, {transform_indices = @transform_7, window_bounds = array<i64: 8, 8, 32>}, {transform_indices = @transform_8, window_bounds = array<i64: 8, 64>}]} {
    %c0_i32 = arith.constant 0 : i32
    %0 = arith.cmpi eq, %arg1, %c0_i32 : i32
    %1 = arith.extui %0 : i1 to i32
    %c0_i32_0 = arith.constant 0 : i32
    %2 = arith.cmpi ne, %1, %c0_i32_0 : i32
    scf.if %2 {
      %c0_74 = arith.constant 0 : index
      %c0_75 = arith.constant 0 : index
      %193 = vector.load %arg8[%c0_74, %c0_75] : memref<8x64xf32, #tpu.memory_space<vmem>>, vector<8x64xf32>
      %c0_76 = arith.constant 0 : index
      %c0_77 = arith.constant 0 : index
      %194 = vector.load %arg10[%c0_76, %c0_77] : memref<8x64xf32, #tpu.memory_space<vmem>>, vector<8x64xf32>
      tpu.vector_store %arg10[%c0_76, %c0_77], %193 {strides = array<i32>} : memref<8x64xf32, #tpu.memory_space<vmem>>, vector<8x64xf32>,
    } else {
    }
    %c0 = arith.constant 0 : index
    %c0_1 = arith.constant 0 : index
    %c0_2 = arith.constant 0 : index
    %3 = vector.load %arg2[%c0, %c0_1, %c0_2] : memref<8x8x32xf32, #tpu.memory_space<vmem>>, vector<8x8x32xf32>
    %4 = vector.shape_cast %3 : vector<8x8x32xf32> to vector<64x32xf32>
    %5 = arith.truncf %4 : vector<64x32xf32> to vector<64x32xbf16>
    %c0_3 = arith.constant 0 : index
    %c0_4 = arith.constant 0 : index
    %6 = vector.load %arg5[%c0_3, %c0_4] : memref<32x64xbf16, #tpu.memory_space<vmem>>, vector<32x64xbf16>
    %cst = arith.constant dense<0.000000e+00> : vector<64x64xf32>
    %7 = tpu.matmul %5, %6, %cst {dimension_numbers = #tpu.dot_dimension_numbers<[1], [0], [0], [1], [0, 0, 1, 1], [], []>} : vector<64x32xbf16>, vector<32x64xbf16>, vector<64x64xf32> -> vector<64x64xf32>
    %8 = vector.extract_strided_slice %7 {offsets = [0, 0], sizes = [64, 32], strides = [1, 1]} : vector<64x64xf32> to vector<64x32xf32>
    %c0_5 = arith.constant 0 : index
    %c0_6 = arith.constant 0 : index
    %9 = vector.load %arg11[%c0_5, %c0_6] : memref<64x32xf32, #tpu.memory_space<vmem>>, vector<64x32xf32>
    tpu.vector_store %arg11[%c0_5, %c0_6], %8 {strides = array<i32>} : memref<64x32xf32, #tpu.memory_space<vmem>>, vector<64x32xf32>,
    %10 = vector.extract_strided_slice %7 {offsets = [0, 32], sizes = [64, 32], strides = [1, 1]} : vector<64x64xf32> to vector<64x32xf32>
    %c0_7 = arith.constant 0 : index
    %c0_8 = arith.constant 0 : index
    %11 = vector.load %arg12[%c0_7, %c0_8] : memref<64x32xf32, #tpu.memory_space<vmem>>, vector<64x32xf32>
    tpu.vector_store %arg12[%c0_7, %c0_8], %10 {strides = array<i32>} : memref<64x32xf32, #tpu.memory_space<vmem>>, vector<64x32xf32>,
    %c0_9 = arith.constant 0 : index
    %c0_10 = arith.constant 0 : index
    %12 = vector.load %arg3[%c0_9, %c0_10] : memref<1x32xf32, #tpu.memory_space<vmem>>, vector<1x32xf32>
    %13 = vector.shape_cast %12 : vector<1x32xf32> to vector<1x32xf32>
    %14 = vector.broadcast %13 : vector<1x32xf32> to vector<8x32xf32>
    %c0_11 = arith.constant 0 : index
    %c0_12 = arith.constant 0 : index
    %15 = vector.load %arg4[%c0_11, %c0_12] : memref<1x32xf32, #tpu.memory_space<vmem>>, vector<1x32xf32>
    %16 = vector.shape_cast %15 : vector<1x32xf32> to vector<1x32xf32>
    %17 = vector.broadcast %16 : vector<1x32xf32> to vector<8x32xf32>
    %c0_13 = arith.constant 0 : index
    %c0_14 = arith.constant 0 : index
    %18 = vector.load %arg10[%c0_13, %c0_14] : memref<8x64xf32, #tpu.memory_space<vmem>>, vector<8x64xf32>
    %19 = vector.extract_strided_slice %18 {offsets = [0, 0], sizes = [8, 32], strides = [1, 1]} : vector<8x64xf32> to vector<8x32xf32>
    %20 = vector.extract_strided_slice %18 {offsets = [0, 32], sizes = [8, 32], strides = [1, 1]} : vector<8x64xf32> to vector<8x32xf32>
    %c0_i32_15 = arith.constant 0 : i32
    %c8_i32 = arith.constant 8 : i32
    %21 = arith.muli %c0_i32_15, %c8_i32 : i32
    %22 = tpu.assume_multiple %21, 8 : i32
    %23 = arith.index_cast %22 : i32 to index
    %c0_16 = arith.constant 0 : index
    %24 = vector.load %arg11[%23, %c0_16] : memref<64x32xf32, #tpu.memory_space<vmem>>, vector<8x32xf32>
    %25 = arith.index_cast %22 : i32 to index
    %c0_17 = arith.constant 0 : index
    %26 = vector.load %arg12[%25, %c0_17] : memref<64x32xf32, #tpu.memory_space<vmem>>, vector<8x32xf32>
    %27 = arith.mulf %14, %19 : vector<8x32xf32>
    %28 = arith.mulf %17, %20 : vector<8x32xf32>
    %29 = arith.subf %27, %28 : vector<8x32xf32>
    %30 = arith.addf %29, %24 : vector<8x32xf32>
    %31 = arith.mulf %14, %20 : vector<8x32xf32>
    %32 = arith.mulf %17, %19 : vector<8x32xf32>
    %33 = arith.addf %31, %32 : vector<8x32xf32>
    %34 = arith.addf %33, %26 : vector<8x32xf32>
    %35 = arith.index_cast %22 : i32 to index
    %c0_18 = arith.constant 0 : index
    %36 = vector.load %arg11[%35, %c0_18] : memref<64x32xf32, #tpu.memory_space<vmem>>, vector<8x32xf32>
    tpu.vector_store %arg11[%35, %c0_18], %30 {strides = array<i32>} : memref<64x32xf32, #tpu.memory_space<vmem>>, vector<8x32xf32>,
    %37 = arith.index_cast %22 : i32 to index
    %c0_19 = arith.constant 0 : index
    %38 = vector.load %arg12[%37, %c0_19] : memref<64x32xf32, #tpu.memory_space<vmem>>, vector<8x32xf32>
    tpu.vector_store %arg12[%37, %c0_19], %34 {strides = array<i32>} : memref<64x32xf32, #tpu.memory_space<vmem>>, vector<8x32xf32>,
    %c1_i32 = arith.constant 1 : i32
    %c8_i32_20 = arith.constant 8 : i32
    %39 = arith.muli %c1_i32, %c8_i32_20 : i32
    %40 = tpu.assume_multiple %39, 8 : i32
    %41 = arith.index_cast %40 : i32 to index
    %c0_21 = arith.constant 0 : index
    %42 = vector.load %arg11[%41, %c0_21] : memref<64x32xf32, #tpu.memory_space<vmem>>, vector<8x32xf32>
    %43 = arith.index_cast %40 : i32 to index
    %c0_22 = arith.constant 0 : index
    %44 = vector.load %arg12[%43, %c0_22] : memref<64x32xf32, #tpu.memory_space<vmem>>, vector<8x32xf32>
    %45 = arith.mulf %14, %30 : vector<8x32xf32>
    %46 = arith.mulf %17, %34 : vector<8x32xf32>
    %47 = arith.subf %45, %46 : vector<8x32xf32>
    %48 = arith.addf %47, %42 : vector<8x32xf32>
    %49 = arith.mulf %14, %34 : vector<8x32xf32>
    %50 = arith.mulf %17, %30 : vector<8x32xf32>
    %51 = arith.addf %49, %50 : vector<8x32xf32>
    %52 = arith.addf %51, %44 : vector<8x32xf32>
    %53 = arith.index_cast %40 : i32 to index
    %c0_23 = arith.constant 0 : index
    %54 = vector.load %arg11[%53, %c0_23] : memref<64x32xf32, #tpu.memory_space<vmem>>, vector<8x32xf32>
    tpu.vector_store %arg11[%53, %c0_23], %48 {strides = array<i32>} : memref<64x32xf32, #tpu.memory_space<vmem>>, vector<8x32xf32>,
    %55 = arith.index_cast %40 : i32 to index
    %c0_24 = arith.constant 0 : index
    %56 = vector.load %arg12[%55, %c0_24] : memref<64x32xf32, #tpu.memory_space<vmem>>, vector<8x32xf32>
    tpu.vector_store %arg12[%55, %c0_24], %52 {strides = array<i32>} : memref<64x32xf32, #tpu.memory_space<vmem>>, vector<8x32xf32>,
    %c2_i32 = arith.constant 2 : i32
    %c8_i32_25 = arith.constant 8 : i32
    %57 = arith.muli %c2_i32, %c8_i32_25 : i32
    %58 = tpu.assume_multiple %57, 8 : i32
    %59 = arith.index_cast %58 : i32 to index
    %c0_26 = arith.constant 0 : index
    %60 = vector.load %arg11[%59, %c0_26] : memref<64x32xf32, #tpu.memory_space<vmem>>, vector<8x32xf32>
    %61 = arith.index_cast %58 : i32 to index
    %c0_27 = arith.constant 0 : index
    %62 = vector.load %arg12[%61, %c0_27] : memref<64x32xf32, #tpu.memory_space<vmem>>, vector<8x32xf32>
    %63 = arith.mulf %14, %48 : vector<8x32xf32>
    %64 = arith.mulf %17, %52 : vector<8x32xf32>
    %65 = arith.subf %63, %64 : vector<8x32xf32>
    %66 = arith.addf %65, %60 : vector<8x32xf32>
    %67 = arith.mulf %14, %52 : vector<8x32xf32>
    %68 = arith.mulf %17, %48 : vector<8x32xf32>
    %69 = arith.addf %67, %68 : vector<8x32xf32>
    %70 = arith.addf %69, %62 : vector<8x32xf32>
    %71 = arith.index_cast %58 : i32 to index
    %c0_28 = arith.constant 0 : index
    %72 = vector.load %arg11[%71, %c0_28] : memref<64x32xf32, #tpu.memory_space<vmem>>, vector<8x32xf32>
    tpu.vector_store %arg11[%71, %c0_28], %66 {strides = array<i32>} : memref<64x32xf32, #tpu.memory_space<vmem>>, vector<8x32xf32>,
    %73 = arith.index_cast %58 : i32 to index
    %c0_29 = arith.constant 0 : index
    %74 = vector.load %arg12[%73, %c0_29] : memref<64x32xf32, #tpu.memory_space<vmem>>, vector<8x32xf32>
    tpu.vector_store %arg12[%73, %c0_29], %70 {strides = array<i32>} : memref<64x32xf32, #tpu.memory_space<vmem>>, vector<8x32xf32>,
    %c3_i32 = arith.constant 3 : i32
    %c8_i32_30 = arith.constant 8 : i32
    %75 = arith.muli %c3_i32, %c8_i32_30 : i32
    %76 = tpu.assume_multiple %75, 8 : i32
    %77 = arith.index_cast %76 : i32 to index
    %c0_31 = arith.constant 0 : index
    %78 = vector.load %arg11[%77, %c0_31] : memref<64x32xf32, #tpu.memory_space<vmem>>, vector<8x32xf32>
    %79 = arith.index_cast %76 : i32 to index
    %c0_32 = arith.constant 0 : index
    %80 = vector.load %arg12[%79, %c0_32] : memref<64x32xf32, #tpu.memory_space<vmem>>, vector<8x32xf32>
    %81 = arith.mulf %14, %66 : vector<8x32xf32>
    %82 = arith.mulf %17, %70 : vector<8x32xf32>
    %83 = arith.subf %81, %82 : vector<8x32xf32>
    %84 = arith.addf %83, %78 : vector<8x32xf32>
    %85 = arith.mulf %14, %70 : vector<8x32xf32>
    %86 = arith.mulf %17, %66 : vector<8x32xf32>
    %87 = arith.addf %85, %86 : vector<8x32xf32>
    %88 = arith.addf %87, %80 : vector<8x32xf32>
    %89 = arith.index_cast %76 : i32 to index
    %c0_33 = arith.constant 0 : index
    %90 = vector.load %arg11[%89, %c0_33] : memref<64x32xf32, #tpu.memory_space<vmem>>, vector<8x32xf32>
    tpu.vector_store %arg11[%89, %c0_33], %84 {strides = array<i32>} : memref<64x32xf32, #tpu.memory_space<vmem>>, vector<8x32xf32>,
    %91 = arith.index_cast %76 : i32 to index
    %c0_34 = arith.constant 0 : index
    %92 = vector.load %arg12[%91, %c0_34] : memref<64x32xf32, #tpu.memory_space<vmem>>, vector<8x32xf32>
    tpu.vector_store %arg12[%91, %c0_34], %88 {strides = array<i32>} : memref<64x32xf32, #tpu.memory_space<vmem>>, vector<8x32xf32>,
    %c4_i32 = arith.constant 4 : i32
    %c8_i32_35 = arith.constant 8 : i32
    %93 = arith.muli %c4_i32, %c8_i32_35 : i32
    %94 = tpu.assume_multiple %93, 8 : i32
    %95 = arith.index_cast %94 : i32 to index
    %c0_36 = arith.constant 0 : index
    %96 = vector.load %arg11[%95, %c0_36] : memref<64x32xf32, #tpu.memory_space<vmem>>, vector<8x32xf32>
    %97 = arith.index_cast %94 : i32 to index
    %c0_37 = arith.constant 0 : index
    %98 = vector.load %arg12[%97, %c0_37] : memref<64x32xf32, #tpu.memory_space<vmem>>, vector<8x32xf32>
    %99 = arith.mulf %14, %84 : vector<8x32xf32>
    %100 = arith.mulf %17, %88 : vector<8x32xf32>
    %101 = arith.subf %99, %100 : vector<8x32xf32>
    %102 = arith.addf %101, %96 : vector<8x32xf32>
    %103 = arith.mulf %14, %88 : vector<8x32xf32>
    %104 = arith.mulf %17, %84 : vector<8x32xf32>
    %105 = arith.addf %103, %104 : vector<8x32xf32>
    %106 = arith.addf %105, %98 : vector<8x32xf32>
    %107 = arith.index_cast %94 : i32 to index
    %c0_38 = arith.constant 0 : index
    %108 = vector.load %arg11[%107, %c0_38] : memref<64x32xf32, #tpu.memory_space<vmem>>, vector<8x32xf32>
    tpu.vector_store %arg11[%107, %c0_38], %102 {strides = array<i32>} : memref<64x32xf32, #tpu.memory_space<vmem>>, vector<8x32xf32>,
    %109 = arith.index_cast %94 : i32 to index
    %c0_39 = arith.constant 0 : index
    %110 = vector.load %arg12[%109, %c0_39] : memref<64x32xf32, #tpu.memory_space<vmem>>, vector<8x32xf32>
    tpu.vector_store %arg12[%109, %c0_39], %106 {strides = array<i32>} : memref<64x32xf32, #tpu.memory_space<vmem>>, vector<8x32xf32>,
    %c5_i32 = arith.constant 5 : i32
    %c8_i32_40 = arith.constant 8 : i32
    %111 = arith.muli %c5_i32, %c8_i32_40 : i32
    %112 = tpu.assume_multiple %111, 8 : i32
    %113 = arith.index_cast %112 : i32 to index
    %c0_41 = arith.constant 0 : index
    %114 = vector.load %arg11[%113, %c0_41] : memref<64x32xf32, #tpu.memory_space<vmem>>, vector<8x32xf32>
    %115 = arith.index_cast %112 : i32 to index
    %c0_42 = arith.constant 0 : index
    %116 = vector.load %arg12[%115, %c0_42] : memref<64x32xf32, #tpu.memory_space<vmem>>, vector<8x32xf32>
    %117 = arith.mulf %14, %102 : vector<8x32xf32>
    %118 = arith.mulf %17, %106 : vector<8x32xf32>
    %119 = arith.subf %117, %118 : vector<8x32xf32>
    %120 = arith.addf %119, %114 : vector<8x32xf32>
    %121 = arith.mulf %14, %106 : vector<8x32xf32>
    %122 = arith.mulf %17, %102 : vector<8x32xf32>
    %123 = arith.addf %121, %122 : vector<8x32xf32>
    %124 = arith.addf %123, %116 : vector<8x32xf32>
    %125 = arith.index_cast %112 : i32 to index
    %c0_43 = arith.constant 0 : index
    %126 = vector.load %arg11[%125, %c0_43] : memref<64x32xf32, #tpu.memory_space<vmem>>, vector<8x32xf32>
    tpu.vector_store %arg11[%125, %c0_43], %120 {strides = array<i32>} : memref<64x32xf32, #tpu.memory_space<vmem>>, vector<8x32xf32>,
    %127 = arith.index_cast %112 : i32 to index
    %c0_44 = arith.constant 0 : index
    %128 = vector.load %arg12[%127, %c0_44] : memref<64x32xf32, #tpu.memory_space<vmem>>, vector<8x32xf32>
    tpu.vector_store %arg12[%127, %c0_44], %124 {strides = array<i32>} : memref<64x32xf32, #tpu.memory_space<vmem>>, vector<8x32xf32>,
    %c6_i32 = arith.constant 6 : i32
    %c8_i32_45 = arith.constant 8 : i32
    %129 = arith.muli %c6_i32, %c8_i32_45 : i32
    %130 = tpu.assume_multiple %129, 8 : i32
    %131 = arith.index_cast %130 : i32 to index
    %c0_46 = arith.constant 0 : index
    %132 = vector.load %arg11[%131, %c0_46] : memref<64x32xf32, #tpu.memory_space<vmem>>, vector<8x32xf32>
    %133 = arith.index_cast %130 : i32 to index
    %c0_47 = arith.constant 0 : index
    %134 = vector.load %arg12[%133, %c0_47] : memref<64x32xf32, #tpu.memory_space<vmem>>, vector<8x32xf32>
    %135 = arith.mulf %14, %120 : vector<8x32xf32>
    %136 = arith.mulf %17, %124 : vector<8x32xf32>
    %137 = arith.subf %135, %136 : vector<8x32xf32>
    %138 = arith.addf %137, %132 : vector<8x32xf32>
    %139 = arith.mulf %14, %124 : vector<8x32xf32>
    %140 = arith.mulf %17, %120 : vector<8x32xf32>
    %141 = arith.addf %139, %140 : vector<8x32xf32>
    %142 = arith.addf %141, %134 : vector<8x32xf32>
    %143 = arith.index_cast %130 : i32 to index
    %c0_48 = arith.constant 0 : index
    %144 = vector.load %arg11[%143, %c0_48] : memref<64x32xf32, #tpu.memory_space<vmem>>, vector<8x32xf32>
    tpu.vector_store %arg11[%143, %c0_48], %138 {strides = array<i32>} : memref<64x32xf32, #tpu.memory_space<vmem>>, vector<8x32xf32>,
    %145 = arith.index_cast %130 : i32 to index
    %c0_49 = arith.constant 0 : index
    %146 = vector.load %arg12[%145, %c0_49] : memref<64x32xf32, #tpu.memory_space<vmem>>, vector<8x32xf32>
    tpu.vector_store %arg12[%145, %c0_49], %142 {strides = array<i32>} : memref<64x32xf32, #tpu.memory_space<vmem>>, vector<8x32xf32>,
    %c7_i32 = arith.constant 7 : i32
    %c8_i32_50 = arith.constant 8 : i32
    %147 = arith.muli %c7_i32, %c8_i32_50 : i32
    %148 = tpu.assume_multiple %147, 8 : i32
    %149 = arith.index_cast %148 : i32 to index
    %c0_51 = arith.constant 0 : index
    %150 = vector.load %arg11[%149, %c0_51] : memref<64x32xf32, #tpu.memory_space<vmem>>, vector<8x32xf32>
    %151 = arith.index_cast %148 : i32 to index
    %c0_52 = arith.constant 0 : index
    %152 = vector.load %arg12[%151, %c0_52] : memref<64x32xf32, #tpu.memory_space<vmem>>, vector<8x32xf32>
    %153 = arith.mulf %14, %138 : vector<8x32xf32>
    %154 = arith.mulf %17, %142 : vector<8x32xf32>
    %155 = arith.subf %153, %154 : vector<8x32xf32>
    %156 = arith.addf %155, %150 : vector<8x32xf32>
    %157 = arith.mulf %14, %142 : vector<8x32xf32>
    %158 = arith.mulf %17, %138 : vector<8x32xf32>
    %159 = arith.addf %157, %158 : vector<8x32xf32>
    %160 = arith.addf %159, %152 : vector<8x32xf32>
    %161 = arith.index_cast %148 : i32 to index
    %c0_53 = arith.constant 0 : index
    %162 = vector.load %arg11[%161, %c0_53] : memref<64x32xf32, #tpu.memory_space<vmem>>, vector<8x32xf32>
    tpu.vector_store %arg11[%161, %c0_53], %156 {strides = array<i32>} : memref<64x32xf32, #tpu.memory_space<vmem>>, vector<8x32xf32>,
    %163 = arith.index_cast %148 : i32 to index
    %c0_54 = arith.constant 0 : index
    %164 = vector.load %arg12[%163, %c0_54] : memref<64x32xf32, #tpu.memory_space<vmem>>, vector<8x32xf32>
    tpu.vector_store %arg12[%163, %c0_54], %160 {strides = array<i32>} : memref<64x32xf32, #tpu.memory_space<vmem>>, vector<8x32xf32>,
    %c8_i32_55 = arith.constant 8 : i32
    %165 = tpu.concatenate %156, %160 in 1 : vector<8x32xf32>, vector<8x32xf32> -> vector<8x64xf32>
    %c0_56 = arith.constant 0 : index
    %c0_57 = arith.constant 0 : index
    %166 = vector.load %arg10[%c0_56, %c0_57] : memref<8x64xf32, #tpu.memory_space<vmem>>, vector<8x64xf32>
    tpu.vector_store %arg10[%c0_56, %c0_57], %165 {strides = array<i32>} : memref<8x64xf32, #tpu.memory_space<vmem>>, vector<8x64xf32>,
    %c0_58 = arith.constant 0 : index
    %c0_59 = arith.constant 0 : index
    %167 = vector.load %arg11[%c0_58, %c0_59] : memref<64x32xf32, #tpu.memory_space<vmem>>, vector<64x32xf32>
    %c0_60 = arith.constant 0 : index
    %c0_61 = arith.constant 0 : index
    %168 = vector.load %arg12[%c0_60, %c0_61] : memref<64x32xf32, #tpu.memory_space<vmem>>, vector<64x32xf32>
    %169 = tpu.concatenate %167, %168 in 1 : vector<64x32xf32>, vector<64x32xf32> -> vector<64x64xf32>
    %170 = arith.truncf %169 : vector<64x64xf32> to vector<64x64xbf16>
    %c0_62 = arith.constant 0 : index
    %c0_63 = arith.constant 0 : index
    %171 = vector.load %arg6[%c0_62, %c0_63] : memref<64x32xbf16, #tpu.memory_space<vmem>>, vector<64x32xbf16>
    %cst_64 = arith.constant dense<0.000000e+00> : vector<64x32xf32>
    %172 = tpu.matmul %170, %171, %cst_64 {dimension_numbers = #tpu.dot_dimension_numbers<[1], [0], [0], [1], [0, 0, 1, 1], [], []>} : vector<64x64xbf16>, vector<64x32xbf16>, vector<64x32xf32> -> vector<64x32xf32>
    %c0_65 = arith.constant 0 : index
    %c0_66 = arith.constant 0 : index
    %173 = vector.load %arg7[%c0_65, %c0_66] : memref<1x32xf32, #tpu.memory_space<vmem>>, vector<1x32xf32>
    %174 = vector.broadcast %173 : vector<1x32xf32> to vector<64x32xf32>
    %175 = arith.mulf %4, %174 : vector<64x32xf32>
    %176 = arith.addf %172, %175 : vector<64x32xf32>
    %177 = arith.mulf %176, %176 : vector<64x32xf32>
    %178 = arith.mulf %176, %177 : vector<64x32xf32>
    %cst_67 = arith.constant 4.471500e-02 : f32
    %179 = vector.broadcast %cst_67 : f32 to vector<64x32xf32>
    %180 = arith.mulf %179, %178 : vector<64x32xf32>
    %181 = arith.addf %176, %180 : vector<64x32xf32>
    %cst_68 = arith.constant 0.797884583 : f32
    %182 = vector.broadcast %cst_68 : f32 to vector<64x32xf32>
    %183 = arith.mulf %182, %181 : vector<64x32xf32>
    %184 = math.tanh %183 : vector<64x32xf32>
    %cst_69 = arith.constant 1.000000e+00 : f32
    %185 = vector.broadcast %cst_69 : f32 to vector<64x32xf32>
    %186 = arith.addf %185, %184 : vector<64x32xf32>
    %cst_70 = arith.constant 5.000000e-01 : f32
    %187 = vector.broadcast %cst_70 : f32 to vector<64x32xf32>
    %188 = arith.mulf %187, %186 : vector<64x32xf32>
    %189 = arith.mulf %176, %188 : vector<64x32xf32>
    %190 = arith.addf %4, %189 : vector<64x32xf32>
    %191 = vector.shape_cast %190 : vector<64x32xf32> to vector<8x8x32xf32>
    %c0_71 = arith.constant 0 : index
    %c0_72 = arith.constant 0 : index
    %c0_73 = arith.constant 0 : index
    %192 = vector.load %arg9[%c0_71, %c0_72, %c0_73] : memref<8x8x32xf32, #tpu.memory_space<vmem>>, vector<8x8x32xf32>
    tpu.vector_store %arg9[%c0_71, %c0_72, %c0_73], %191 {strides = array<i32>} : memref<8x8x32xf32, #tpu.memory_space<vmem>>, vector<8x8x32xf32>,
    return
  }
  func.func @transform_0(%arg0: i32, %arg1: i32) -> (i32, i32, i32) {
    %c0_i32 = arith.constant 0 : i32
    %c0_i32_0 = arith.constant 0 : i32
    return %arg1, %arg0, %c0_i32 : i32, i32, i32
  }
  func.func @transform_1(%arg0: i32, %arg1: i32) -> (i32, i32) {
    %c0_i32 = arith.constant 0 : i32
    %c0_i32_0 = arith.constant 0 : i32
    %c0_i32_1 = arith.constant 0 : i32
    return %c0_i32, %c0_i32_0 : i32, i32
  }
  func.func @transform_2(%arg0: i32, %arg1: i32) -> (i32, i32) {
    %c0_i32 = arith.constant 0 : i32
    %c0_i32_0 = arith.constant 0 : i32
    %c0_i32_1 = arith.constant 0 : i32
    return %c0_i32, %c0_i32_0 : i32, i32
  }
  func.func @transform_3(%arg0: i32, %arg1: i32) -> (i32, i32) {
    %c0_i32 = arith.constant 0 : i32
    %c0_i32_0 = arith.constant 0 : i32
    %c0_i32_1 = arith.constant 0 : i32
    return %c0_i32, %c0_i32_0 : i32, i32
  }
  func.func @transform_4(%arg0: i32, %arg1: i32) -> (i32, i32) {
    %c0_i32 = arith.constant 0 : i32
    %c0_i32_0 = arith.constant 0 : i32
    %c0_i32_1 = arith.constant 0 : i32
    return %c0_i32, %c0_i32_0 : i32, i32
  }
  func.func @transform_5(%arg0: i32, %arg1: i32) -> (i32, i32) {
    %c0_i32 = arith.constant 0 : i32
    %c0_i32_0 = arith.constant 0 : i32
    %c0_i32_1 = arith.constant 0 : i32
    return %c0_i32, %c0_i32_0 : i32, i32
  }
  func.func @transform_6(%arg0: i32, %arg1: i32) -> (i32, i32) {
    %c0_i32 = arith.constant 0 : i32
    %c0_i32_0 = arith.constant 0 : i32
    return %arg0, %c0_i32 : i32, i32
  }
  func.func @transform_7(%arg0: i32, %arg1: i32) -> (i32, i32, i32) {
    %c0_i32 = arith.constant 0 : i32
    %c0_i32_0 = arith.constant 0 : i32
    return %arg1, %arg0, %c0_i32 : i32, i32, i32
  }
  func.func @transform_8(%arg0: i32, %arg1: i32) -> (i32, i32) {
    %c0_i32 = arith.constant 0 : i32
    %c0_i32_0 = arith.constant 0 : i32
    return %arg0, %c0_i32 : i32, i32
  }
}

</mosaic_0001>

<llo_original>
// kernel: tpu_custom_call.1
$region0: #{tpu_custom_call.1}
  #allocation0 [shape = 'u32[]', space=smem, size = 0x4, offset = 0x4, fixed_abs, tag = 'smem constant byte address 0x4 - core index']
  #allocation1 [shape = 'u32[144,128]{1,0:T(1,128)}', space=vmem, size = 0x12000, scoped, tag = 'internal scratch']
  #allocation2 [shape = 'f32[64,32]{1,0:T(8,128)}', space=vmem, size = 0x8000, scoped, tag = 'scratch operand']
  #allocation3 [shape = 'f32[64,32]{1,0:T(8,128)}', space=vmem, size = 0x8000, scoped, tag = 'scratch operand']
  %s0 = inlined_call_operand.hbm [shape: f32[8,8,32], index: 0, kind: input, shape index: {}]
  %s1 = inlined_call_operand.vmem [shape: f32[1,32], index: 1, kind: input, shape index: {}]
  %s2 = inlined_call_operand.vmem [shape: f32[1,32], index: 2, kind: input, shape index: {}]
  %s3 = inlined_call_operand.vmem [shape: bf16[32,64], index: 3, kind: input, shape index: {}]
  %s4 = inlined_call_operand.vmem [shape: bf16[64,32], index: 4, kind: input, shape index: {}]
  %s5 = inlined_call_operand.vmem [shape: f32[1,32], index: 5, kind: input, shape index: {}]
  %s6 = inlined_call_operand.vmem [shape: f32[8,64], index: 6, kind: input, shape index: {}]
  %s7 = inlined_call_operand.hbm [shape: f32[8,8,32], index: 7, kind: output, shape index: {0}]
  %s8 = inlined_call_operand.hbm [shape: f32[8,64], index: 8, kind: output, shape index: {1}]
  %9 = xla_tuple %s7, %s8
  %s10 = sld [smem:[#allocation0]]
  $region54: #{tpu_custom_call.1} parent=0
    _
  %s12 = ssub.s32 1, %s10
  %s13 = scalar_select 0, %s12, %s10
  $region1: #{tpu_custom_call.1} parent=0
    #allocation4 [shape = 'u8[32768]{0}', space=vmem, size = 0x8000, scoped, tag = 'input window, operand 0, single buffered']
    #allocation5 [shape = 's32[1]{0}', space=sflag, size = 0x4, scoped, tag = 'scoped memory for tpu_custom_call.1']
    #allocation6 [shape = 's32[1]{0}', space=sflag, size = 0x4, scoped, tag = 'scoped memory for tpu_custom_call.1']
    #allocation7 [shape = 'u8[32768]{0}', space=vmem, size = 0x8000, scoped, tag = 'output window, operand 0, single buffered']
    #allocation8 [shape = 'u8[4096]{0}', space=vmem, size = 0x1000, scoped, tag = 'output window, operand 1, single buffered']
    #allocation9 [shape = 's32[1]{0}', space=sflag, size = 0x4, scoped, tag = 'scoped memory for tpu_custom_call.1']
    %14 = vsyncpa [#allocation5], 0
    %15 = vsyncpa [#allocation6], 0
    %16 = vsyncpa [#allocation9], 0
    // Predicated region
    $region2: #{tpu_custom_call.1} parent=1 // pred_check
      _
    $region3: #{tpu_custom_call.1} parent=1 // pred_check_branch
      %18 = sbr.rel (0) target = $region5
    $region4: #{tpu_custom_call.1} parent=1 // pred_region
      %s20 = ssub.s32 1024, 1024
      %21 = vsyncadd [#allocation5], %s20
      %s22 = sshll.u32 [#allocation4], 4
      %s23 = int_to_ptr.vmem [resolvable:$true] %s22
      %28 = dma.hbm_to_vmem [thread:$0]  %s0, 1024, %s23, [#allocation5], 128, 128, 8
    $region5: #{tpu_custom_call.1} parent=1 // pred_fallthru
      _
    // Predicated region
    $region6: #{tpu_custom_call.1} parent=1 // pred_check
      _
    $region7: #{tpu_custom_call.1} parent=1 // pred_check_branch
      %30 = sbr.rel (0) target = $region9
    $region8: #{tpu_custom_call.1} parent=1 // pred_region
      _
    $region9: #{tpu_custom_call.1} parent=1 // pred_fallthru
      _
    // Predicated region
    $region10: #{tpu_custom_call.1} parent=1 // pred_check
      _
    $region11: #{tpu_custom_call.1} parent=1 // pred_check_branch
      %32 = sbr.rel (0) target = $region13
    $region12: #{tpu_custom_call.1} parent=1 // pred_region
      _
    $region13: #{tpu_custom_call.1} parent=1 // pred_fallthru
      _
    // Predicated region
    $region14: #{tpu_custom_call.1} parent=1 // pred_check
      _
    $region15: #{tpu_custom_call.1} parent=1 // pred_check_branch
      %34 = sbr.rel (0) target = $region17
    $region16: #{tpu_custom_call.1} parent=1 // pred_region
      _
    $region17: #{tpu_custom_call.1} parent=1 // pred_fallthru
      _
    // Predicated region
    $region18: #{tpu_custom_call.1} parent=1 // pred_check
      _
    $region19: #{tpu_custom_call.1} parent=1 // pred_check_branch
      %36 = sbr.rel (0) target = $region21
    $region20: #{tpu_custom_call.1} parent=1 // pred_region
      _
    $region21: #{tpu_custom_call.1} parent=1 // pred_fallthru
      _
    // Predicated region
    $region22: #{tpu_custom_call.1} parent=1 // pred_check
      _
    $region23: #{tpu_custom_call.1} parent=1 // pred_check_branch
      %38 = sbr.rel (0) target = $region25
    $region24: #{tpu_custom_call.1} parent=1 // pred_region
      _
    $region25: #{tpu_custom_call.1} parent=1 // pred_fallthru
      _
    // Predicated region
    $region26: #{tpu_custom_call.1} parent=1 // pred_check
      _
    $region27: #{tpu_custom_call.1} parent=1 // pred_check_branch
      %40 = sbr.rel (0) target = $region29
    $region28: #{tpu_custom_call.1} parent=1 // pred_region
      _
    $region29: #{tpu_custom_call.1} parent=1 // pred_fallthru
      _
    // Predicated region
    $region30: #{tpu_custom_call.1} parent=1 // pred_check
      _
    $region31: #{tpu_custom_call.1} parent=1 // pred_check_branch
      %42 = sbr.rel (0) target = $region33
    $region32: #{tpu_custom_call.1} parent=1 // pred_region
      %43 = dma.done [#allocation5], 1024
    $region33: #{tpu_custom_call.1} parent=1 // pred_fallthru
      _
    %p45 = scmp.eq.s32.totalorder 0, 0
    // Predicated region
    $region34: #{tpu_custom_call.1} parent=1 // pred_check
      %p46 = pneg %p45
    $region35: #{tpu_custom_call.1} parent=1 // pred_check_branch
      %48 = sbr.rel (%p46) target = $region37
    $region36: #{tpu_custom_call.1} parent=1 // pred_region
      %v49 = vld [vmem:[%s6] sm:$0xff]
      %vm50 = vcmask 523264
      %51 = vst.msk [vmem:[#allocation8] sm:$0xff] %vm50, %v49
    $region37: #{tpu_custom_call.1} parent=1 // pred_fallthru
      _
    %v52 = vld [vmem:[#allocation4] sm:$0xff]
    %v53 = vld [vmem:[#allocation4 + $0x8] sm:$0xff]
    %v54 = vld [vmem:[#allocation4 + $0x10] sm:$0xff]
    %v55 = vld [vmem:[#allocation4 + $0x18] sm:$0xff]
    %v56 = vld [vmem:[#allocation4 + $0x20] sm:$0xff]
    %v57 = vld [vmem:[#allocation4 + $0x28] sm:$0xff]
    %v58 = vld [vmem:[#allocation4 + $0x30] sm:$0xff]
    %v59 = vld [vmem:[#allocation4 + $0x38] sm:$0xff]
    %v60 = vpack.c.bf16 %v53, %v52
    %v61 = vpack.c.bf16 %v55, %v54
    %v62 = vpack.c.bf16 %v57, %v56
    %v63 = vpack.c.bf16 %v59, %v58
    %v64 = vld [vmem:[%s3] sm:$0xf]
    %v65 = vld [vmem:[%s3 + $0x4] sm:$0xf]
    %v66 = vld [vmem:[%s3 + $0x8] sm:$0xf]
    %v67 = vld [vmem:[%s3 + $0xc] sm:$0xf]
    %v72 = vunpack.c.l.b16 %v64
    %v73 = vunpack.c.l.b16 %v65
    %v74 = vunpack.c.l.b16 %v66
    %v75 = vunpack.c.l.b16 %v67
    %v76 = vpack.c.b16 %v73, %v72
    %v77 = vpack.c.b16 %v75, %v74
    %vm80 = vcmask 261120
    %v82 = vsel %vm80, %v60, 0
    %v85 = vsel %vm80, %v61, 0
    %v88 = vsel %vm80, %v62, 0
    %v91 = vsel %vm80, %v63, 0
    %93 = vmatprep.subr.bf16.mxu0 0
    %94 = vmatpush1.bf16.msra.mxu0 %v76
    %95 = vmatprep.subr.bf16.mxu0 0
    %96 = vmatpush1.bf16.msra.mxu0 %v77
    %97 = vmatprep.subr.bf16.mxu0 0
    %98 = vmatpush1.bf16.msra.mxu0 0
    %99 = vmatprep.subr.bf16.mxu0 0
    %100 = vmatpush1.bf16.msra.mxu0 0
    %101 = vmatprep.subr.bf16.mxu0 0
    %102 = vmatpush1.bf16.msra.mxu0 0
    %103 = vmatprep.subr.bf16.mxu0 0
    %104 = vmatpush1.bf16.msra.mxu0 0
    %105 = vmatprep.subr.bf16.mxu0 0
    %106 = vmatpush1.bf16.msra.mxu0 0
    %107 = vmatprep.subr.bf16.mxu0 0
    %108 = vmatpush1.bf16.msra.mxu0 0
    %109 = vmatprep.subr.bf16.mxu0 0
    %110 = vmatpush1.bf16.msra.mxu0 0
    %111 = vmatprep.subr.bf16.mxu0 0
    %112 = vmatpush1.bf16.msra.mxu0 0
    %113 = vmatprep.subr.bf16.mxu0 0
    %114 = vmatpush1.bf16.msra.mxu0 0
    %115 = vmatprep.subr.bf16.mxu0 0
    %116 = vmatpush1.bf16.msra.mxu0 0
    %117 = vmatprep.subr.bf16.mxu0 0
    %118 = vmatpush1.bf16.msra.mxu0 0
    %119 = vmatprep.subr.bf16.mxu0 0
    %120 = vmatpush1.bf16.msra.mxu0 0
    %121 = vmatprep.subr.bf16.mxu0 0
    %122 = vmatpush1.bf16.msra.mxu0 0
    %123 = vmatprep.subr.bf16.mxu0 0
    %124 = vmatpush1.bf16.msra.mxu0 0
    %125 = vmatprep.mubr.bf16.mxu0 0
    %126 = vmatmul.mubr.bf16.gmra.mrb[0].mxu0 %v82
    %v127 = vpop.f32.mrb[0].mxu0
    %v128 = vadd.f32 0.0, %v127
    %v129 = vpop.f32.mrb[0].mxu0
    %v130 = vpop.f32.mrb[0].mxu0
    %v131 = vadd.f32 0.0, %v130
    %v132 = vpop.f32.mrb[0].mxu0
    %133 = vmatprep.mubr.bf16.mxu0 0
    %134 = vmatmul.mubr.bf16.gmra.mrb[0].mxu0 %v85
    %v135 = vpop.f32.mrb[0].mxu0
    %v136 = vadd.f32 0.0, %v135
    %v137 = vpop.f32.mrb[0].mxu0
    %v138 = vpop.f32.mrb[0].mxu0
    %v139 = vadd.f32 0.0, %v138
    %v140 = vpop.f32.mrb[0].mxu0
    %141 = vmatprep.mubr.bf16.mxu0 0
    %142 = vmatmul.mubr.bf16.gmra.mrb[0].mxu0 %v88
    %v143 = vpop.f32.mrb[0].mxu0
    %v144 = vadd.f32 0.0, %v143
    %v145 = vpop.f32.mrb[0].mxu0
    %v146 = vpop.f32.mrb[0].mxu0
    %v147 = vadd.f32 0.0, %v146
    %v148 = vpop.f32.mrb[0].mxu0
    %149 = vmatprep.mubr.bf16.mxu0 0
    %150 = vmatmul.mubr.bf16.gmra.mrb[0].mxu0 %v91
    %v151 = vpop.f32.mrb[0].mxu0
    %v152 = vadd.f32 0.0, %v151
    %v153 = vpop.f32.mrb[0].mxu0
    %v154 = vpop.f32.mrb[0].mxu0
    %v155 = vadd.f32 0.0, %v154
    %v156 = vpop.f32.mrb[0].mxu0
    %157 = vdwg.mxu0
    %158 = vst.msk [vmem:[#allocation2] sm:$0xff] %vm80, %v128
    %159 = vst.msk [vmem:[#allocation2 + $0x8] sm:$0xff] %vm80, %v131
    %160 = vst.msk [vmem:[#allocation2 + $0x10] sm:$0xff] %vm80, %v136
    %161 = vst.msk [vmem:[#allocation2 + $0x18] sm:$0xff] %vm80, %v139
    %162 = vst.msk [vmem:[#allocation2 + $0x20] sm:$0xff] %vm80, %v144
    %163 = vst.msk [vmem:[#allocation2 + $0x28] sm:$0xff] %vm80, %v147
    %164 = vst.msk [vmem:[#allocation2 + $0x30] sm:$0xff] %vm80, %v152
    %165 = vst.msk [vmem:[#allocation2 + $0x38] sm:$0xff] %vm80, %v155
    %174 = vrot.lane.b32.xlu0 %v128, 96
    %v175 = vpop.permute.xlu0 %174
    %176 = vrot.lane.b32.xlu0 %v131, 96
    %v177 = vpop.permute.xlu0 %176
    %178 = vrot.lane.b32.xlu0 %v136, 96
    %v179 = vpop.permute.xlu0 %178
    %180 = vrot.lane.b32.xlu0 %v139, 96
    %v181 = vpop.permute.xlu0 %180
    %182 = vrot.lane.b32.xlu0 %v144, 96
    %v183 = vpop.permute.xlu0 %182
    %184 = vrot.lane.b32.xlu0 %v147, 96
    %v185 = vpop.permute.xlu0 %184
    %186 = vrot.lane.b32.xlu0 %v152, 96
    %v187 = vpop.permute.xlu0 %186
    %188 = vrot.lane.b32.xlu0 %v155, 96
    %v189 = vpop.permute.xlu0 %188
    %198 = vst.msk [vmem:[#allocation3] sm:$0xff] %vm80, %v175
    %199 = vst.msk [vmem:[#allocation3 + $0x8] sm:$0xff] %vm80, %v177
    %200 = vst.msk [vmem:[#allocation3 + $0x10] sm:$0xff] %vm80, %v179
    %201 = vst.msk [vmem:[#allocation3 + $0x18] sm:$0xff] %vm80, %v181
    %202 = vst.msk [vmem:[#allocation3 + $0x20] sm:$0xff] %vm80, %v183
    %203 = vst.msk [vmem:[#allocation3 + $0x28] sm:$0xff] %vm80, %v185
    %204 = vst.msk [vmem:[#allocation3 + $0x30] sm:$0xff] %vm80, %v187
    %205 = vst.msk [vmem:[#allocation3 + $0x38] sm:$0xff] %vm80, %v189
    %v206 = vld [vmem:[%s1] sm:$0x1]
    %v208 = vlaneseq
    %v209 = vshrl.u32 %v208, 7
    %v210 = vsub.s32 0, %v209
    %v211 = vrot.slane %v206, %v210
    %v213 = vld [vmem:[%s2] sm:$0x1]
    %v215 = vlaneseq
    %v216 = vshrl.u32 %v215, 7
    %v217 = vsub.s32 0, %v216
    %v218 = vrot.slane %v213, %v217
    %v220 = vld [vmem:[#allocation8] sm:$0xff]
    %v221 = vld [vmem:[#allocation2] sm:$0xff]
    %v222 = vld [vmem:[#allocation3] sm:$0xff]
    %v223 = vmul.f32 %v211, %v220
    %225 = vrot.lane.b32.xlu0 %v220, 96
    %v226 = vpop.permute.xlu0 %225
    %v228 = vmul.f32 %v218, %v226
    %v229 = vsub.f32 %v223, %v228
    %v230 = vadd.f32 %v229, %v221
    %v231 = vmul.f32 %v211, %v226
    %v232 = vmul.f32 %v218, %v220
    %v233 = vadd.f32 %v231, %v232
    %v234 = vadd.f32 %v233, %v222
    %235 = vst.msk [vmem:[#allocation2] sm:$0xff] %vm80, %v230
    %236 = vst.msk [vmem:[#allocation3] sm:$0xff] %vm80, %v234
    %s237 = scalar_lea.vmem [#allocation2], 8
    %v238 = vld [vmem:[%s237] sm:$0xff]
    %s239 = scalar_lea.vmem [#allocation3], 8
    %v240 = vld [vmem:[%s239] sm:$0xff]
    %v241 = vmul.f32 %v211, %v230
    %v242 = vmul.f32 %v218, %v234
    %v243 = vsub.f32 %v241, %v242
    %v244 = vadd.f32 %v243, %v238
    %v245 = vmul.f32 %v211, %v234
    %v246 = vmul.f32 %v218, %v230
    %v247 = vadd.f32 %v245, %v246
    %v248 = vadd.f32 %v247, %v240
    %249 = vst.msk [vmem:[%s237] sm:$0xff] %vm80, %v244
    %250 = vst.msk [vmem:[%s239] sm:$0xff] %vm80, %v248
    %s251 = scalar_lea.vmem [#allocation2], 16
    %v252 = vld [vmem:[%s251] sm:$0xff]
    %s253 = scalar_lea.vmem [#allocation3], 16
    %v254 = vld [vmem:[%s253] sm:$0xff]
    %v255 = vmul.f32 %v211, %v244
    %v256 = vmul.f32 %v218, %v248
    %v257 = vsub.f32 %v255, %v256
    %v258 = vadd.f32 %v257, %v252
    %v259 = vmul.f32 %v211, %v248
    %v260 = vmul.f32 %v218, %v244
    %v261 = vadd.f32 %v259, %v260
    %v262 = vadd.f32 %v261, %v254
    %263 = vst.msk [vmem:[%s251] sm:$0xff] %vm80, %v258
    %264 = vst.msk [vmem:[%s253] sm:$0xff] %vm80, %v262
    %s265 = scalar_lea.vmem [#allocation2], 24
    %v266 = vld [vmem:[%s265] sm:$0xff]
    %s267 = scalar_lea.vmem [#allocation3], 24
    %v268 = vld [vmem:[%s267] sm:$0xff]
    %v269 = vmul.f32 %v211, %v258
    %v270 = vmul.f32 %v218, %v262
    %v271 = vsub.f32 %v269, %v270
    %v272 = vadd.f32 %v271, %v266
    %v273 = vmul.f32 %v211, %v262
    %v274 = vmul.f32 %v218, %v258
    %v275 = vadd.f32 %v273, %v274
    %v276 = vadd.f32 %v275, %v268
    %277 = vst.msk [vmem:[%s265] sm:$0xff] %vm80, %v272
    %278 = vst.msk [vmem:[%s267] sm:$0xff] %vm80, %v276
    %s279 = scalar_lea.vmem [#allocation2], 32
    %v280 = vld [vmem:[%s279] sm:$0xff]
    %s281 = scalar_lea.vmem [#allocation3], 32
    %v282 = vld [vmem:[%s281] sm:$0xff]
    %v283 = vmul.f32 %v211, %v272
    %v284 = vmul.f32 %v218, %v276
    %v285 = vsub.f32 %v283, %v284
    %v286 = vadd.f32 %v285, %v280
    %v287 = vmul.f32 %v211, %v276
    %v288 = vmul.f32 %v218, %v272
    %v289 = vadd.f32 %v287, %v288
    %v290 = vadd.f32 %v289, %v282
    %291 = vst.msk [vmem:[%s279] sm:$0xff] %vm80, %v286
    %292 = vst.msk [vmem:[%s281] sm:$0xff] %vm80, %v290
    %s293 = scalar_lea.vmem [#allocation2], 40
    %v294 = vld [vmem:[%s293] sm:$0xff]
    %s295 = scalar_lea.vmem [#allocation3], 40
    %v296 = vld [vmem:[%s295] sm:$0xff]
    %v297 = vmul.f32 %v211, %v286
    %v298 = vmul.f32 %v218, %v290
    %v299 = vsub.f32 %v297, %v298
    %v300 = vadd.f32 %v299, %v294
    %v301 = vmul.f32 %v211, %v290
    %v302 = vmul.f32 %v218, %v286
    %v303 = vadd.f32 %v301, %v302
    %v304 = vadd.f32 %v303, %v296
    %305 = vst.msk [vmem:[%s293] sm:$0xff] %vm80, %v300
    %306 = vst.msk [vmem:[%s295] sm:$0xff] %vm80, %v304
    %s307 = scalar_lea.vmem [#allocation2], 48
    %v308 = vld [vmem:[%s307] sm:$0xff]
    %s309 = scalar_lea.vmem [#allocation3], 48
    %v310 = vld [vmem:[%s309] sm:$0xff]
    %v311 = vmul.f32 %v211, %v300
    %v312 = vmul.f32 %v218, %v304
    %v313 = vsub.f32 %v311, %v312
    %v314 = vadd.f32 %v313, %v308
    %v315 = vmul.f32 %v211, %v304
    %v316 = vmul.f32 %v218, %v300
    %v317 = vadd.f32 %v315, %v316
    %v318 = vadd.f32 %v317, %v310
    %319 = vst.msk [vmem:[%s307] sm:$0xff] %vm80, %v314
    %320 = vst.msk [vmem:[%s309] sm:$0xff] %vm80, %v318
    %s321 = scalar_lea.vmem [#allocation2], 56
    %v322 = vld [vmem:[%s321] sm:$0xff]
    %s323 = scalar_lea.vmem [#allocation3], 56
    %v324 = vld [vmem:[%s323] sm:$0xff]
    %v325 = vmul.f32 %v211, %v314
    %v326 = vmul.f32 %v218, %v318
    %v327 = vsub.f32 %v325, %v326
    %v328 = vadd.f32 %v327, %v322
    %v329 = vmul.f32 %v211, %v318
    %v330 = vmul.f32 %v218, %v314
    %v331 = vadd.f32 %v329, %v330
    %v332 = vadd.f32 %v331, %v324
    %333 = vst.msk [vmem:[%s321] sm:$0xff] %vm80, %v328
    %334 = vst.msk [vmem:[%s323] sm:$0xff] %vm80, %v332
    %336 = vrot.lane.b32.xlu0 %v332, 32
    %v337 = vpop.permute.xlu0 %336
    %v339 = vsel %vm80, %v328, %v337
    %vm340 = vcmask 523264
    %341 = vst.msk [vmem:[#allocation8] sm:$0xff] %vm340, %v339
    %v342 = vld [vmem:[#allocation2] sm:$0xff]
    %v343 = vld [vmem:[#allocation2 + $0x8] sm:$0xff]
    %v344 = vld [vmem:[#allocation2 + $0x10] sm:$0xff]
    %v345 = vld [vmem:[#allocation2 + $0x18] sm:$0xff]
    %v346 = vld [vmem:[#allocation2 + $0x20] sm:$0xff]
    %v347 = vld [vmem:[#allocation2 + $0x28] sm:$0xff]
    %v348 = vld [vmem:[#allocation2 + $0x30] sm:$0xff]
    %v349 = vld [vmem:[#allocation2 + $0x38] sm:$0xff]
    %v350 = vld [vmem:[#allocation3] sm:$0xff]
    %v351 = vld [vmem:[#allocation3 + $0x8] sm:$0xff]
    %v352 = vld [vmem:[#allocation3 + $0x10] sm:$0xff]
    %v353 = vld [vmem:[#allocation3 + $0x18] sm:$0xff]
    %v354 = vld [vmem:[#allocation3 + $0x20] sm:$0xff]
    %v355 = vld [vmem:[#allocation3 + $0x28] sm:$0xff]
    %v356 = vld [vmem:[#allocation3 + $0x30] sm:$0xff]
    %v357 = vld [vmem:[#allocation3 + $0x38] sm:$0xff]
    %366 = vrot.lane.b32.xlu0 %v350, 32
    %v367 = vpop.permute.xlu0 %366
    %368 = vrot.lane.b32.xlu0 %v351, 32
    %v369 = vpop.permute.xlu0 %368
    %370 = vrot.lane.b32.xlu0 %v352, 32
    %v371 = vpop.permute.xlu0 %370
    %372 = vrot.lane.b32.xlu0 %v353, 32
    %v373 = vpop.permute.xlu0 %372
    %374 = vrot.lane.b32.xlu0 %v354, 32
    %v375 = vpop.permute.xlu0 %374
    %376 = vrot.lane.b32.xlu0 %v355, 32
    %v377 = vpop.permute.xlu0 %376
    %378 = vrot.lane.b32.xlu0 %v356, 32
    %v379 = vpop.permute.xlu0 %378
    %380 = vrot.lane.b32.xlu0 %v357, 32
    %v381 = vpop.permute.xlu0 %380
    %v390 = vsel %vm80, %v342, %v367
    %v391 = vsel %vm80, %v343, %v369
    %v392 = vsel %vm80, %v344, %v371
    %v393 = vsel %vm80, %v345, %v373
    %v394 = vsel %vm80, %v346, %v375
    %v395 = vsel %vm80, %v347, %v377
    %v396 = vsel %vm80, %v348, %v379
    %v397 = vsel %vm80, %v349, %v381
    %v398 = vpack.c.bf16 %v391, %v390
    %v399 = vpack.c.bf16 %v393, %v392
    %v400 = vpack.c.bf16 %v395, %v394
    %v401 = vpack.c.bf16 %v397, %v396
    %v402 = vld [vmem:[%s4] sm:$0xf]
    %v403 = vld [vmem:[%s4 + $0x4] sm:$0xf]
    %v404 = vld [vmem:[%s4 + $0x8] sm:$0xf]
    %v405 = vld [vmem:[%s4 + $0xc] sm:$0xf]
    %v406 = vld [vmem:[%s4 + $0x10] sm:$0xf]
    %v407 = vld [vmem:[%s4 + $0x14] sm:$0xf]
    %v408 = vld [vmem:[%s4 + $0x18] sm:$0xf]
    %v409 = vld [vmem:[%s4 + $0x1c] sm:$0xf]
    %v410 = vld [vmem:[%s5] sm:$0x1]
    %v412 = vlaneseq
    %v413 = vshrl.u32 %v412, 7
    %v414 = vsub.s32 0, %v413
    %v415 = vrot.slane %v410, %v414
    %v417 = vmul.f32 %v52, %v415
    %v418 = vmul.f32 %v53, %v415
    %v419 = vmul.f32 %v54, %v415
    %v420 = vmul.f32 %v55, %v415
    %v421 = vmul.f32 %v56, %v415
    %v422 = vmul.f32 %v57, %v415
    %v423 = vmul.f32 %v58, %v415
    %v424 = vmul.f32 %v59, %v415
    %v433 = vunpack.c.l.b16 %v402
    %v434 = vunpack.c.l.b16 %v403
    %v435 = vunpack.c.l.b16 %v404
    %v436 = vunpack.c.l.b16 %v405
    %v437 = vunpack.c.l.b16 %v406
    %v438 = vunpack.c.l.b16 %v407
    %v439 = vunpack.c.l.b16 %v408
    %v440 = vunpack.c.l.b16 %v409
    %v441 = vpack.c.b16 %v434, %v433
    %v442 = vpack.c.b16 %v436, %v435
    %v443 = vpack.c.b16 %v438, %v437
    %v444 = vpack.c.b16 %v440, %v439
    %v450 = vsel %vm340, %v398, 0
    %v453 = vsel %vm340, %v399, 0
    %v456 = vsel %vm340, %v400, 0
    %v459 = vsel %vm340, %v401, 0
    %461 = vmatprep.subr.bf16.mxu0 0
    %462 = vmatpush1.bf16.msra.mxu0 %v441
    %463 = vmatprep.subr.bf16.mxu0 0
    %464 = vmatpush1.bf16.msra.mxu0 %v442
    %465 = vmatprep.subr.bf16.mxu0 0
    %466 = vmatpush1.bf16.msra.mxu0 %v443
    %467 = vmatprep.subr.bf16.mxu0 0
    %468 = vmatpush1.bf16.msra.mxu0 %v444
    %469 = vmatprep.subr.bf16.mxu0 0
    %470 = vmatpush1.bf16.msra.mxu0 0
    %471 = vmatprep.subr.bf16.mxu0 0
    %472 = vmatpush1.bf16.msra.mxu0 0
    %473 = vmatprep.subr.bf16.mxu0 0
    %474 = vmatpush1.bf16.msra.mxu0 0
    %475 = vmatprep.subr.bf16.mxu0 0
    %476 = vmatpush1.bf16.msra.mxu0 0
    %477 = vmatprep.subr.bf16.mxu0 0
    %478 = vmatpush1.bf16.msra.mxu0 0
    %479 = vmatprep.subr.bf16.mxu0 0
    %480 = vmatpush1.bf16.msra.mxu0 0
    %481 = vmatprep.subr.bf16.mxu0 0
    %482 = vmatpush1.bf16.msra.mxu0 0
    %483 = vmatprep.subr.bf16.mxu0 0
    %484 = vmatpush1.bf16.msra.mxu0 0
    %485 = vmatprep.subr.bf16.mxu0 0
    %486 = vmatpush1.bf16.msra.mxu0 0
    %487 = vmatprep.subr.bf16.mxu0 0
    %488 = vmatpush1.bf16.msra.mxu0 0
    %489 = vmatprep.subr.bf16.mxu0 0
    %490 = vmatpush1.bf16.msra.mxu0 0
    %491 = vmatprep.subr.bf16.mxu0 0
    %492 = vmatpush1.bf16.msra.mxu0 0
    %493 = vmatprep.mubr.bf16.mxu0 0
    %494 = vmatmul.mubr.bf16.gmra.mrb[0].mxu0 %v450
    %v495 = vpop.f32.mrb[0].mxu0
    %v496 = vadd.f32 %v417, %v495
    %v497 = vpop.f32.mrb[0].mxu0
    %v498 = vpop.f32.mrb[0].mxu0
    %v499 = vadd.f32 %v418, %v498
    %v500 = vpop.f32.mrb[0].mxu0
    %501 = vmatprep.mubr.bf16.mxu0 0
    %502 = vmatmul.mubr.bf16.gmra.mrb[0].mxu0 %v453
    %v503 = vpop.f32.mrb[0].mxu0
    %v504 = vadd.f32 %v419, %v503
    %v505 = vpop.f32.mrb[0].mxu0
    %v506 = vpop.f32.mrb[0].mxu0
    %v507 = vadd.f32 %v420, %v506
    %v508 = vpop.f32.mrb[0].mxu0
    %509 = vmatprep.mubr.bf16.mxu0 0
    %510 = vmatmul.mubr.bf16.gmra.mrb[0].mxu0 %v456
    %v511 = vpop.f32.mrb[0].mxu0
    %v512 = vadd.f32 %v421, %v511
    %v513 = vpop.f32.mrb[0].mxu0
    %v514 = vpop.f32.mrb[0].mxu0
    %v515 = vadd.f32 %v422, %v514
    %v516 = vpop.f32.mrb[0].mxu0
    %517 = vmatprep.mubr.bf16.mxu0 0
    %518 = vmatmul.mubr.bf16.gmra.mrb[0].mxu0 %v459
    %v519 = vpop.f32.mrb[0].mxu0
    %v520 = vadd.f32 %v423, %v519
    %v521 = vpop.f32.mrb[0].mxu0
    %v522 = vpop.f32.mrb[0].mxu0
    %v523 = vadd.f32 %v424, %v522
    %v524 = vpop.f32.mrb[0].mxu0
    %525 = vdwg.mxu0
    %v526 = vmul.f32 %v496, %v496
    %v527 = vmul.f32 %v499, %v499
    %v528 = vmul.f32 %v504, %v504
    %v529 = vmul.f32 %v507, %v507
    %v530 = vmul.f32 %v512, %v512
    %v531 = vmul.f32 %v515, %v515
    %v532 = vmul.f32 %v520, %v520
    %v533 = vmul.f32 %v523, %v523
    %v534 = vmul.f32 %v496, %v526
    %v535 = vmul.f32 %v499, %v527
    %v536 = vmul.f32 %v504, %v528
    %v537 = vmul.f32 %v507, %v529
    %v538 = vmul.f32 %v512, %v530
    %v539 = vmul.f32 %v515, %v531
    %v540 = vmul.f32 %v520, %v532
    %v541 = vmul.f32 %v523, %v533
    %v542 = vmul.f32 %v534, 0.044715
    %v543 = vmul.f32 %v535, 0.044715
    %v544 = vmul.f32 %v536, 0.044715
    %v545 = vmul.f32 %v537, 0.044715
    %v546 = vmul.f32 %v538, 0.044715
    %v547 = vmul.f32 %v539, 0.044715
    %v548 = vmul.f32 %v540, 0.044715
    %v549 = vmul.f32 %v541, 0.044715
    %v550 = vadd.f32 %v496, %v542
    %v551 = vadd.f32 %v499, %v543
    %v552 = vadd.f32 %v504, %v544
    %v553 = vadd.f32 %v507, %v545
    %v554 = vadd.f32 %v512, %v546
    %v555 = vadd.f32 %v515, %v547
    %v556 = vadd.f32 %v520, %v548
    %v557 = vadd.f32 %v523, %v549
    %v558 = vmul.f32 %v550, 0.7978846
    %v559 = vmul.f32 %v551, 0.7978846
    %v560 = vmul.f32 %v552, 0.7978846
    %v561 = vmul.f32 %v553, 0.7978846
    %v562 = vmul.f32 %v554, 0.7978846
    %v563 = vmul.f32 %v555, 0.7978846
    %v564 = vmul.f32 %v556, 0.7978846
    %v565 = vmul.f32 %v557, 0.7978846
    %v566 = vtanh.pop %v558
    %v567 = vtanh.pop %v559
    %v568 = vtanh.pop %v560
    %v569 = vtanh.pop %v561
    %v570 = vtanh.pop %v562
    %v571 = vtanh.pop %v563
    %v572 = vtanh.pop %v564
    %v573 = vtanh.pop %v565
    %v574 = vadd.f32 %v566, 1.0
    %v575 = vadd.f32 %v567, 1.0
    %v576 = vadd.f32 %v568, 1.0
    %v577 = vadd.f32 %v569, 1.0
    %v578 = vadd.f32 %v570, 1.0
    %v579 = vadd.f32 %v571, 1.0
    %v580 = vadd.f32 %v572, 1.0
    %v581 = vadd.f32 %v573, 1.0
    %v582 = vmul.f32 %v574, 0.5
    %v583 = vmul.f32 %v575, 0.5
    %v584 = vmul.f32 %v576, 0.5
    %v585 = vmul.f32 %v577, 0.5
    %v586 = vmul.f32 %v578, 0.5
    %v587 = vmul.f32 %v579, 0.5
    %v588 = vmul.f32 %v580, 0.5
    %v589 = vmul.f32 %v581, 0.5
    %v590 = vmul.f32 %v496, %v582
    %v591 = vmul.f32 %v499, %v583
    %v592 = vmul.f32 %v504, %v584
    %v593 = vmul.f32 %v507, %v585
    %v594 = vmul.f32 %v512, %v586
    %v595 = vmul.f32 %v515, %v587
    %v596 = vmul.f32 %v520, %v588
    %v597 = vmul.f32 %v523, %v589
    %v598 = vadd.f32 %v52, %v590
    %v599 = vadd.f32 %v53, %v591
    %v600 = vadd.f32 %v54, %v592
    %v601 = vadd.f32 %v55, %v593
    %v602 = vadd.f32 %v56, %v594
    %v603 = vadd.f32 %v57, %v595
    %v604 = vadd.f32 %v58, %v596
    %v605 = vadd.f32 %v59, %v597
    %606 = vst.msk [vmem:[#allocation7] sm:$0xff] %vm80, %v598
    %607 = vst.msk [vmem:[#allocation7 + $0x8] sm:$0xff] %vm80, %v599
    %608 = vst.msk [vmem:[#allocation7 + $0x10] sm:$0xff] %vm80, %v600
    %609 = vst.msk [vmem:[#allocation7 + $0x18] sm:$0xff] %vm80, %v601
    %610 = vst.msk [vmem:[#allocation7 + $0x20] sm:$0xff] %vm80, %v602
    %611 = vst.msk [vmem:[#allocation7 + $0x28] sm:$0xff] %vm80, %v603
    %612 = vst.msk [vmem:[#allocation7 + $0x30] sm:$0xff] %vm80, %v604
    %613 = vst.msk [vmem:[#allocation7 + $0x38] sm:$0xff] %vm80, %v605
    // Predicated region
    $region38: #{tpu_custom_call.1} parent=1 // pred_check
      _
    $region39: #{tpu_custom_call.1} parent=1 // pred_check_branch
      %615 = sbr.rel (0) target = $region41
    $region40: #{tpu_custom_call.1} parent=1 // pred_region
      %s617 = ssub.s32 1024, 1024
      %618 = vsyncadd [#allocation6], %s617
      %s619 = sshll.u32 [#allocation7], 4
      %s620 = int_to_ptr.vmem [resolvable:$true] %s619
      %625 = dma.vmem_to_hbm [thread:$0]  %s620, 1024, %s7, [#allocation6], 128, 128, 8
    $region41: #{tpu_custom_call.1} parent=1 // pred_fallthru
      _
    // Predicated region
    $region42: #{tpu_custom_call.1} parent=1 // pred_check
      _
    $region43: #{tpu_custom_call.1} parent=1 // pred_check_branch
      %627 = sbr.rel (0) target = $region45
    $region44: #{tpu_custom_call.1} parent=1 // pred_region
      %s629 = ssub.s32 128, 128
      %630 = vsyncadd [#allocation9], %s629
      %s632 = sshll.u32 [#allocation8], 4
      %s633 = int_to_ptr.vmem [resolvable:$true] %s632
      %635 = dma.vmem_to_hbm [thread:$0]  %s633, 128, %s8, [#allocation9]
    $region45: #{tpu_custom_call.1} parent=1 // pred_fallthru
      _
    // Predicated region
    $region46: #{tpu_custom_call.1} parent=1 // pred_check
      _
    $region47: #{tpu_custom_call.1} parent=1 // pred_check_branch
      %637 = sbr.rel (0) target = $region49
    $region48: #{tpu_custom_call.1} parent=1 // pred_region
      %638 = dma.done [#allocation6], 1024
    $region49: #{tpu_custom_call.1} parent=1 // pred_fallthru
      _
    // Predicated region
    $region50: #{tpu_custom_call.1} parent=1 // pred_check
      _
    $region51: #{tpu_custom_call.1} parent=1 // pred_check_branch
      %640 = sbr.rel (0) target = $region53
    $region52: #{tpu_custom_call.1} parent=1 // pred_region
      %641 = dma.done [#allocation9], 128
    $region53: #{tpu_custom_call.1} parent=1 // pred_fallthru
      _
    %642 = vsyncpa [#allocation5], 1
    %643 = vsyncpa [#allocation6], 1
    %644 = vsyncpa [#allocation9], 1

</llo_original>
